<compile_context>
chip_gen: v5e
topology: v5e:2x2
jax: 0.10.0
libtpu: 0.0.40
codegen_flags: <defaults>
</compile_context>

<pallas_src>
import functools

import numpy as np
import jax
import jax.numpy as jnp
from jax import lax
from jax.experimental import pallas as pl
from jax.experimental.pallas import tpu as pltpu


# ----------------------------------------------------------------------------
# small helpers
# ----------------------------------------------------------------------------
def _round_up(v, m):
    return -(-v // m) * m


def _vmem_capacity_bytes():
    """Physical VMEM per TensorCore (generation-aware, conservative fallback)."""
    try:
        cap = int(pltpu.get_tpu_info().vmem_capacity_bytes)
        if cap > 0:
            return cap
    except Exception:
        pass
    return 64 * 1024 * 1024        # v7x per-TC VMEM = smallest current part


def _select_tiles(R, C_eff, A, L_out, N, comp_bytes, out_bytes, cap,
                  tile_l=None, tile_r=None, tile_c=None):
    """Pick (TR, TC, TL) = row / contraction-channel / length tiles."""
    big = cap >= (96 << 20)        # 128 MiB parts (v5e/v6e) vs 64 MiB/TC (v7x)

    TL = tile_l if tile_l is not None else (1024 if big else 512)
    TL = min(TL, _round_up(max(L_out, 1), 128))
    TL = max(128, (TL // 128) * 128)                    # lane-dense stores

    TC = tile_c if tile_c is not None else (
        C_eff if C_eff <= (1024 if big else 512) else (512 if big else 256))
    TC = TC if TC < C_eff else C_eff

    TR = tile_r if tile_r is not None else (
        R if R <= (1024 if big else 512) else (512 if big else 256))
    TR = min(TR, R)

    def workset(tr, tc, tl):       # double-buffered VMEM footprint estimate
        xb = tc * tl * comp_bytes * (2 if A > 1 else 1)
        wb = tr * A * tc * comp_bytes
        ob = tr * tl * out_bytes
        return 2 * (xb + wb + ob) + tr * tl * 4         # + f32 accumulator

    budget = int(cap * 0.55)       # headroom for compiler scratch / pipeline
    while workset(TR, TC, TL) > budget:
        if TC > 128:
            TC = 128 if TC <= 256 else _round_up(TC // 2, 128)
        elif TR > 128:
            TR = 128 if TR <= 256 else _round_up(TR // 2, 8)
        elif TL > 128:
            TL = max(128, (TL // 2) // 128 * 128)
        else:
            break

    # Feed both v7x TensorCores / keep the pipeline busy: want >= ~8 parallel steps.
    n_r = -(-R // TR)
    while N * n_r * (-(-L_out // TL)) < 8 and TL > 128:
        TL = max(128, (TL // 2) // 128 * 128)

    # Tiled (non-full) dims must satisfy the (8, 128) block constraints.
    if TC < C_eff:
        TC = max(128, (TC // 128) * 128)
    if TR < R:
        TR = max(8, (TR // 8) * 8)
    return TR, TC, TL


# ----------------------------------------------------------------------------
# Pallas kernel: tap-expanded stride-1 correlation, f32 accumulation
# ----------------------------------------------------------------------------
def _conv1d_tap_kernel(*refs, has_bias, has_halo):
    """One (row-tile, channel-tile, length-tile) step of the correlation.

      x_cur: (TC, TL)      current length tile of x_eff          (compute dtype)
      x_nxt: (TC, TL)      next tile (halo source)               [only if A > 1]
      w:     (A, TR, TC)   weight tile, taps leading             (compute dtype)
      b:     (TR, 1)       f32 bias                              [only if bias]
      o:     (TR, TL)      output tile
      acc:   (TR, TL) f32  accumulator scratch (lives across the C grid axis)
    """
    idx = 0
    xc_ref = refs[idx]; idx += 1
    xn_ref = None
    if has_halo:
        xn_ref = refs[idx]; idx += 1
    w_ref = refs[idx]; idx += 1
    b_ref = None
    if has_bias:
        b_ref = refs[idx]; idx += 1
    o_ref = refs[idx]; idx += 1
    acc_ref = refs[idx]

    c = pl.program_id(3)

    @pl.when(c == 0)
    def _init():
        acc_ref[...] = jnp.zeros_like(acc_ref)

    A = w_ref.shape[0]
    TL = o_ref.shape[-1]

    x = xc_ref[...]
    if has_halo:                       # (TC, TL + A - 1): halo from the next tile
        x = jnp.concatenate([x, xn_ref[:, :A - 1]], axis=-1)

    acc = acc_ref[...]
    for a in range(A):                 # taps expanded in-kernel: A accumulating matmuls
        rhs = x[:, a:a + TL] if has_halo else x
        acc += jnp.dot(w_ref[a], rhs, preferred_element_type=jnp.float32)
    acc_ref[...] = acc

    @pl.when(c == pl.num_programs(3) - 1)
    def _finalize():
        r = acc_ref[...]
        if has_bias:
            r = r + b_ref[...]         # per-channel f32 bias epilogue
        o_ref[...] = r.astype(o_ref.dtype)


def pallas_conv1d(x_eff, w3, bias, l_out, out_dtype, *,
                  compute_dtype=jnp.bfloat16,
                  tile_l=None, tile_r=None, tile_c=None):
    """y[n, r, l] = sum_{c, a} w3[r, a, c] * x_eff[n, c, l + a]   (+ bias[r])."""
    N, C_eff, Lx_in = x_eff.shape
    R, A, C_w = w3.shape
    assert C_w == C_eff
    has_halo = A > 1
    has_bias = bias is not None

    comp_bytes = jnp.dtype(compute_dtype).itemsize
    out_bytes = jnp.dtype(out_dtype).itemsize
    cap = _vmem_capacity_bytes()
    TR, TC, TL = _select_tiles(R, C_eff, A, l_out, N, comp_bytes, out_bytes, cap,
                               tile_l=tile_l, tile_r=tile_r, tile_c=tile_c)
    assert A <= TL, "tap count must not exceed the L tile"

    n_t = -(-l_out // TL)
    n_r = -(-R // TR)
    n_c = -(-C_eff // TC)
    R_pad, C_pad = n_r * TR, n_c * TC
    L_pad = n_t * TL
    Lx = L_pad + (TL if has_halo else 0)     # +1 tile so the halo block always exists

    # Zero padding (rows / channels / length) contributes nothing to the result.
    x_p = x_eff
    if C_pad != C_eff or Lx != Lx_in:
        x_p = jnp.pad(x_eff, ((0, 0), (0, C_pad - C_eff), (0, Lx - Lx_in)))
    x_p = x_p.astype(compute_dtype)

    w_p = jnp.transpose(w3, (1, 0, 2))       # (A, R, C_eff): taps leading
    if R_pad != R or C_pad != C_eff:
        w_p = jnp.pad(w_p, ((0, 0), (0, R_pad - R), (0, C_pad - C_eff)))
    w_p = w_p.astype(compute_dtype)

    in_specs = [pl.BlockSpec((pl.Squeezed(), TC, TL), lambda n, r, t, c: (n, c, t))]
    operands = [x_p]
    if has_halo:
        in_specs.append(pl.BlockSpec((pl.Squeezed(), TC, TL),
                                     lambda n, r, t, c: (n, c, t + 1)))
        operands.append(x_p)
    in_specs.append(pl.BlockSpec((A, TR, TC), lambda n, r, t, c: (0, r, c)))
    operands.append(w_p)
    if has_bias:
        b_p = bias.astype(jnp.float32)
        if R_pad != R:
            b_p = jnp.pad(b_p, ((0, R_pad - R),))
        in_specs.append(pl.BlockSpec((TR, 1), lambda n, r, t, c: (r, 0)))
        operands.append(b_p.reshape(R_pad, 1))

    flops = 2 * N * R_pad * C_pad * A * L_pad
    bytes_accessed = (int(x_p.size) * comp_bytes * (2 if has_halo else 1) * n_r
                      + int(w_p.size) * comp_bytes * N * n_t
                      + N * R_pad * L_pad * out_bytes)
    vmem_limit = int(max(32 << 20, min(cap - (12 << 20), int(cap * 0.85))))

    y = pl.pallas_call(
        functools.partial(_conv1d_tap_kernel, has_bias=has_bias, has_halo=has_halo),
        out_shape=jax.ShapeDtypeStruct((N, R_pad, L_pad), out_dtype),
        grid=(N, n_r, n_t, n_c),
        in_specs=in_specs,
        out_specs=pl.BlockSpec((pl.Squeezed(), TR, TL), lambda n, r, t, c: (n, r, t)),
        scratch_shapes=[pltpu.VMEM((TR, TL), jnp.float32)],
        compiler_params=pltpu.CompilerParams(
            dimension_semantics=("parallel", "parallel", "parallel", "arbitrary"),
            vmem_limit_bytes=vmem_limit),
        cost_estimate=pl.CostEstimate(flops=int(flops), transcendentals=0,
                                      bytes_accessed=int(bytes_accessed)),
    )(*operands)

    if R_pad != R or L_pad != l_out:
        y = y[:, :R, :l_out]
    return y


# ----------------------------------------------------------------------------
# Glue: FIR setup, effective weights, padding, polyphase decompositions
# ----------------------------------------------------------------------------
def _setup_kernel(k):
    k = np.asarray(k, dtype=np.float32)
    k /= np.sum(k)
    assert k.ndim == 1
    return k


def _effective_weight(w, kf):
    """w_eff[co, ci, r] = sum_t w[co, ci, t] * kf[r - t]  (full convolution)."""
    conv_row = lambda row: jnp.convolve(row, kf, mode='full',
                                        precision=lax.Precision.HIGHEST)
    return jax.vmap(jax.vmap(conv_row))(w)


def _pad1d(x, left, right):
    """Pad (or crop, if negative) along the last axis."""
    if left < 0:
        x = x[:, :, -left:]
        left = 0
    if right < 0:
        x = x[:, :, :x.shape[2] + right]
        right = 0
    if left or right:
        x = jnp.pad(x, ((0, 0), (0, 0), (left, right)))
    return x


# ----------------------------------------------------------------------------
# Module
# ----------------------------------------------------------------------------
class Conv1dPallas:
    """Conv1d layer with optional StyleGAN2-style fused up/down-sampling (forward)."""

    def __init__(self, in_ch, out_ch, kernel, up=False, down=False,
                 resample_kernel=(1, 3, 3, 1), use_bias=True, key=None,
                 compute_dtype=jnp.bfloat16, tile_l=None, tile_r=None, tile_c=None):
        assert not (up and down)
        assert kernel >= 1 and kernel % 2 == 1
        key = jax.random.PRNGKey(0) if key is None else key
        kw, kb = jax.random.split(key)
        # Reference zero-inits unless kernel_init is given; use a scaled normal
        # so the kernel computes something non-trivial.
        self.weight = 0.1 * jax.random.normal(kw, (out_ch, in_ch, kernel), jnp.float32)
        self.bias = (0.1 * jax.random.normal(kb, (out_ch,), jnp.float32)
                     if use_bias else None)
        self.up = up
        self.down = down
        self.resample_kernel = resample_kernel
        self.kernel = kernel
        self.use_bias = use_bias
        self.compute_dtype = compute_dtype
        self.tile_l, self.tile_r, self.tile_c = tile_l, tile_r, tile_c

    # ---- fused FIR + downsample: strided correlation with the effective kernel,
    # converted to stride-1 by an INPUT polyphase split (C_in -> C_in*f channels).
    def _build_down(self, x, w, bias, f):
        N, C_in, L = x.shape
        C_out, _, K = w.shape
        k = _setup_kernel(self.resample_kernel)               # gain = 1
        kf = jnp.asarray(k[::-1].copy())
        w_eff = _effective_weight(w, kf)                      # (C_out, C_in, K_eff)
        firN = k.shape[0]
        K_eff = K + firN - 1
        p = firN - f + (K - 1)
        x_pad = _pad1d(x, (p + 1) // 2, p // 2)               # (N, C_in, Lp)
        Lp = x_pad.shape[2]
        L_out = (Lp - K_eff) // f + 1
        A = -(-K_eff // f)                                    # taps per phase
        J = L_out + A - 1
        need = f * J
        if need > Lp:
            x_pad = jnp.pad(x_pad, ((0, 0), (0, 0), (0, need - Lp)))
        elif need < Lp:
            x_pad = x_pad[:, :, :need]
        # x_eff[n, c*f + p, j] = x_pad[n, c, f*j + p]
        x_eff = (x_pad.reshape(N, C_in, J, f)
                 .transpose(0, 1, 3, 2)
                 .reshape(N, C_in * f, J))
        # w3[r, a, c*f + p] = w_eff[r, c, f*a + p]  (zero beyond K_eff)
        w_eff = jnp.pad(w_eff, ((0, 0), (0, 0), (0, f * A - K_eff)))
        w3 = (w_eff.reshape(C_out, C_in, A, f)
              .transpose(0, 1, 3, 2)                          # (C_out, C_in, f, A)
              .reshape(C_out, C_in * f, A)
              .transpose(0, 2, 1))                            # (C_out, A, C_in*f)
        return x_eff, w3, bias, L_out, (lambda y: y)

    # ---- fused upsample + FIR: OUTPUT polyphase weights on the ORIGINAL x
    # (the zero-stuffed input is never materialized or DMA'd).
    def _build_up(self, x, w, bias, f):
        N, C_in, L = x.shape
        C_out, _, K = w.shape
        k = _setup_kernel(self.resample_kernel) * f           # gain=1, scaled by factor
        kf = jnp.asarray(k[::-1].copy())
        w_eff = _effective_weight(w, kf)                      # (C_out, C_in, K_eff)
        firN = k.shape[0]
        K_eff = K + firN - 1
        p = firN - f - (K - 1)
        q0 = (p + 1) // 2 + f - 1
        P_l = (K - 1) + q0
        # y[:, co, f*l + b] = sum_{ci,a} w_eff[co,ci, rho_b + f*a] * x[:, ci, l + a + d_b]
        phases = []
        for b in range(f):
            rho = (P_l - b) % f
            a_b = max(0, -(-(K_eff - rho) // f))              # ceil
            d_b = (b + rho - P_l) // f                        # exact division
            phases.append((rho, a_b, d_b))
        active = [ph for ph in phases if ph[1] > 0]
        assert active, "degenerate up-sampling configuration"
        off_min = min(d for _, _, d in active)
        off_max = max(d + a_b - 1 for _, a_b, d in active)
        A_tot = off_max - off_min + 1
        w_up = jnp.zeros((f, C_out, C_in, A_tot), w.dtype)
        for b, (rho, a_b, d_b) in enumerate(phases):
            if a_b == 0:
                continue
            taps = w_eff[:, :, rho::f][:, :, :a_b]            # (C_out, C_in, a_b)
            s = d_b - off_min
            w_up = w_up.at[b, :, :, s:s + a_b].set(taps)
        # rows = f*C_out (phase-major); kernel layout (R, A, C_eff)
        w3 = (w_up.transpose(0, 1, 3, 2)                      # (f, C_out, A_tot, C_in)
              .reshape(f * C_out, A_tot, C_in))
        x_eff = _pad1d(x, -off_min, off_max)                  # length L + A_tot - 1
        bias_k = None if bias is None else jnp.tile(bias, (f,))

        def post(y):                                          # (N, f*C_out, L) -> (N, C_out, f*L)
            # TODO(synk): fuse this phase de-interleave into the kernel's output
            # store (XLU (f, TL)->(TL, f) transpose) to save one HBM round trip.
            return (y.reshape(N, f, C_out, L)
                    .transpose(0, 2, 3, 1)
                    .reshape(N, C_out, f * L))
        return x_eff, w3, bias_k, L, post

    def __call__(self, x):
        w = self.weight
        C_out, C_in, K = w.shape
        N, _, L = x.shape
        f = 2  # default factor of upsample_conv_1d / conv_downsample_1d
        bias = self.bias

        if self.up:
            x_eff, w3, bias_k, l_out, post = self._build_up(x, w, bias, f)
        elif self.down:
            x_eff, w3, bias_k, l_out, post = self._build_down(x, w, bias, f)
        else:
            x_eff = _pad1d(x, K // 2, K // 2)
            w3 = jnp.transpose(w, (0, 2, 1))                  # (C_out, K, C_in)
            bias_k, l_out, post = bias, L, (lambda y: y)

        # TODO(synk): the PyTorch reference adds bias.reshape(1,-1,1,1), which cannot
        # legally broadcast over a 3-D [N,C,L] tensor; the intended per-channel
        # (1,C,1) bias is applied inside the kernel epilogue (in f32) instead.
        y = pallas_conv1d(x_eff, w3, bias_k, l_out, x.dtype,
                          compute_dtype=self.compute_dtype,
                          tile_l=self.tile_l, tile_r=self.tile_r, tile_c=self.tile_c)
        return post(y)


# ----------------------------------------------------------------------------
# Pure-lax references (built directly from the upfirdn / conv definitions)
# ----------------------------------------------------------------------------
_DN = ('NCH', 'OIH', 'NCH')
_HI = lax.Precision.HIGHEST


def _ref_plain(x, w, bias):
    pad = w.shape[2] // 2
    y = lax.conv_general_dilated(x, w, (1,), [(pad, pad)],
                                 dimension_numbers=_DN, precision=_HI)
    return y + bias.reshape(1, -1, 1)


def _ref_down(x, w, bias, rk=(1, 3, 3, 1), factor=2):
    k = _setup_kernel(rk)                                     # gain = 1
    firN, convH, C = k.shape[0], w.shape[2], x.shape[1]
    p = firN - factor + (convH - 1)
    xp = jnp.pad(x, ((0, 0), (0, 0), ((p + 1) // 2, p // 2)))
    k_dw = jnp.tile(jnp.asarray(k[::-1].copy()).reshape(1, 1, firN), (C, 1, 1))
    z = lax.conv_general_dilated(xp, k_dw, (1,), 'VALID', feature_group_count=C,
                                 dimension_numbers=_DN, precision=_HI)
    y = lax.conv_general_dilated(z, w, (factor,), 'VALID',
                                 dimension_numbers=_DN, precision=_HI)
    return y + bias.reshape(1, -1, 1)


def _ref_up(x, w, bias, rk=(1, 3, 3, 1), factor=2):
    k = _setup_kernel(rk) * factor                            # gain = 1
    firN, convH, C_out = k.shape[0], w.shape[2], w.shape[0]
    # conv_transpose1d(x, flip+transpose(w), stride=f) == lhs-dilated correlation with w
    v = lax.conv_general_dilated(x, w, (1,), [(convH - 1, convH - 1)],
                                 lhs_dilation=(factor,),
                                 dimension_numbers=_DN, precision=_HI)
    p = firN - factor - (convH - 1)
    q0 = (p + 1) // 2 + factor - 1
    q1 = p // 2 + 1
    vp = jnp.pad(v, ((0, 0), (0, 0), (q0, q1)))
    k_dw = jnp.tile(jnp.asarray(k[::-1].copy()).reshape(1, 1, firN), (C_out, 1, 1))
    z = lax.conv_general_dilated(vp, k_dw, (1,), 'VALID', feature_group_count=C_out,
                                 dimension_numbers=_DN, precision=_HI)
    return z + bias.reshape(1, -1, 1)


# ----------------------------------------------------------------------------
if __name__ == "__main__":
    key = jax.random.PRNGKey(0)
    kx, km, kx2, kx3, km3 = jax.random.split(key, 5)

    N, C_in, C_out, L, K = 2, 4, 6, 16, 3
    x = jax.random.normal(kx, (N, C_in, L), jnp.float32)

    plain = Conv1dPallas(C_in, C_out, K, key=km)
    down = Conv1dPallas(C_in, C_out, K, down=True, key=km)
    up = Conv1dPallas(C_in, C_out, K, up=True, key=km)
    nobias = Conv1dPallas(C_in, C_out, K, use_bias=False, key=km)

    y_plain = jax.block_until_ready(plain(x))    # (2, 6, 16)
    y_down = jax.block_until_ready(down(x))      # (2, 6, 8)
    y_up = jax.block_until_ready(up(x))          # (2, 6, 32)
    y_nob = jax.block_until_ready(nobias(x))     # (2, 6, 16)

    r_plain = _ref_plain(x, plain.weight, plain.bias)
    r_down = _ref_down(x, down.weight, down.bias)
    r_up = _ref_up(x, up.weight, up.bias)
    r_nob = _ref_plain(x, nobias.weight, jnp.zeros((C_out,), jnp.float32))

    assert y_plain.shape == (N, C_out, L)
    assert y_down.shape == (N, C_out, L // 2)
    assert y_up.shape == (N, C_out, L * 2)

    tol = dict(atol=3e-2, rtol=3e-2)             # bf16 operands, f32 accumulation
    assert jnp.allclose(y_plain, r_plain, **tol)
    assert jnp.allclose(y_down, r_down, **tol)
    assert jnp.allclose(y_up, r_up, **tol)
    assert jnp.allclose(y_nob, r_nob, **tol)

    # Medium length: exercises L-tiling, in-kernel halo handling across tiles
    # and the ">= 8 parallel grid steps" heuristic with default tile selection.
    L2 = 1280
    x2 = jax.random.normal(kx2, (N, C_in, L2), jnp.float32)
    y2 = jax.block_until_ready(plain(x2))
    r2 = _ref_plain(x2, plain.weight, plain.bias)
    assert y2.shape == (N, C_out, L2)
    assert jnp.allclose(y2, r2, **tol)

    # R / C / L grid tiling with padding + accumulator across the contraction
    # axis, validated with the f32 compute escape hatch (tight tolerance).
    C_in3, C_out3, K3, L3 = 256, 320, 5, 640
    x3 = jax.random.normal(kx3, (N, C_in3, L3), jnp.float32)
    tiled = Conv1dPallas(C_in3, C_out3, K3, key=km3, compute_dtype=jnp.float32,
                         tile_l=256, tile_r=128, tile_c=128)
    y3 = jax.block_until_ready(tiled(x3))
    r3 = _ref_plain(x3, tiled.weight, tiled.bias)
    assert y3.shape == (N, C_out3, L3)
    assert jnp.allclose(y3, r3, atol=1e-3, rtol=1e-3)

    print("KERNEL_OK")
</pallas_src>

<mosaic_0001>
module attributes {stable_mosaic.version = 11 : i64} {
  func.func @_conv1d_tap_kernel(%arg0: i32, %arg1: i32, %arg2: i32, %arg3: i32, %arg4: memref<1x4x128xbf16, #tpu.memory_space<vmem>>, %arg5: memref<1x4x128xbf16, #tpu.memory_space<vmem>>, %arg6: memref<3x6x4xbf16, #tpu.memory_space<vmem>>, %arg7: memref<6x1xf32, #tpu.memory_space<vmem>>, %arg8: memref<1x6x128xf32, #tpu.memory_space<vmem>>, %arg9: memref<6x128xf32, #tpu.memory_space<vmem>>) attributes {dimension_semantics = [#tpu.dimension_semantics<parallel>, #tpu.dimension_semantics<parallel>, #tpu.dimension_semantics<parallel>, #tpu.dimension_semantics<arbitrary>], iteration_bounds = array<i64: 2, 1, 1, 1>, scalar_prefetch = 0 : i64, scratch_operands = 1 : i64, tpu.core_type = #tpu.core_type<tc>, window_params = [{transform_indices = @transform_0, window_bounds = array<i64: 1, 4, 128>}, {transform_indices = @transform_1, window_bounds = array<i64: 1, 4, 128>}, {transform_indices = @transform_2, window_bounds = array<i64: 3, 6, 4>}, {transform_indices = @transform_3, window_bounds = array<i64: 6, 1>}, {transform_indices = @transform_4, window_bounds = array<i64: 1, 6, 128>}]} {
    %c0_i32 = arith.constant 0 : i32
    %0 = arith.cmpi eq, %arg3, %c0_i32 : i32
    %1 = arith.extui %0 : i1 to i32
    %c0_i32_0 = arith.constant 0 : i32
    %2 = arith.cmpi ne, %1, %c0_i32_0 : i32
    scf.if %2 {
      %cst_21 = arith.constant 0.000000e+00 : f32
      %28 = vector.broadcast %cst_21 : f32 to vector<6x128xf32>
      %c0_22 = arith.constant 0 : index
      %c0_23 = arith.constant 0 : index
      %29 = vector.load %arg9[%c0_22, %c0_23] : memref<6x128xf32, #tpu.memory_space<vmem>>, vector<6x128xf32>
      tpu.vector_store %arg9[%c0_22, %c0_23], %28 {strides = array<i32>} : memref<6x128xf32, #tpu.memory_space<vmem>>, vector<6x128xf32>,
    } else {
    }
    %c0 = arith.constant 0 : index
    %c0_1 = arith.constant 0 : index
    %c0_2 = arith.constant 0 : index
    %3 = vector.load %arg4[%c0, %c0_1, %c0_2] : memref<1x4x128xbf16, #tpu.memory_space<vmem>>, vector<1x4x128xbf16>
    %4 = vector.shape_cast %3 : vector<1x4x128xbf16> to vector<4x128xbf16>
    %c0_3 = arith.constant 0 : index
    %c0_4 = arith.constant 0 : index
    %c0_5 = arith.constant 0 : index
    %5 = vector.load %arg5[%c0_3, %c0_4, %c0_5] : memref<1x4x128xbf16, #tpu.memory_space<vmem>>, vector<1x4x2xbf16>
    %6 = vector.shape_cast %5 : vector<1x4x2xbf16> to vector<4x2xbf16>
    %7 = tpu.concatenate %4, %6 in 1 : vector<4x128xbf16>, vector<4x2xbf16> -> vector<4x130xbf16>
    %c0_6 = arith.constant 0 : index
    %c0_7 = arith.constant 0 : index
    %8 = vector.load %arg9[%c0_6, %c0_7] : memref<6x128xf32, #tpu.memory_space<vmem>>, vector<6x128xf32>
    %9 = vector.extract_strided_slice %7 {offsets = [0, 0], sizes = [4, 128], strides = [1, 1]} : vector<4x130xbf16> to vector<4x128xbf16>
    %c0_8 = arith.constant 0 : index
    %c0_9 = arith.constant 0 : index
    %c0_10 = arith.constant 0 : index
    %10 = vector.load %arg6[%c0_8, %c0_9, %c0_10] : memref<3x6x4xbf16, #tpu.memory_space<vmem>>, vector<1x6x4xbf16>
    %11 = vector.shape_cast %10 : vector<1x6x4xbf16> to vector<6x4xbf16>
    %cst = arith.constant dense<0.000000e+00> : vector<6x128xf32>
    %12 = tpu.matmul %11, %9, %cst {dimension_numbers = #tpu.dot_dimension_numbers<[1], [0], [0], [1], [0, 0, 1, 1], [], []>} : vector<6x4xbf16>, vector<4x128xbf16>, vector<6x128xf32> -> vector<6x128xf32>
    %13 = arith.addf %8, %12 : vector<6x128xf32>
    %14 = vector.extract_strided_slice %7 {offsets = [0, 1], sizes = [4, 128], strides = [1, 1]} : vector<4x130xbf16> to vector<4x128xbf16>
    %c1 = arith.constant 1 : index
    %c0_11 = arith.constant 0 : index
    %c0_12 = arith.constant 0 : index
    %15 = vector.load %arg6[%c1, %c0_11, %c0_12] : memref<3x6x4xbf16, #tpu.memory_space<vmem>>, vector<1x6x4xbf16>
    %16 = vector.shape_cast %15 : vector<1x6x4xbf16> to vector<6x4xbf16>
    %cst_13 = arith.constant dense<0.000000e+00> : vector<6x128xf32>
    %17 = tpu.matmul %16, %14, %cst_13 {dimension_numbers = #tpu.dot_dimension_numbers<[1], [0], [0], [1], [0, 0, 1, 1], [], []>} : vector<6x4xbf16>, vector<4x128xbf16>, vector<6x128xf32> -> vector<6x128xf32>
    %18 = arith.addf %13, %17 : vector<6x128xf32>
    %19 = vector.extract_strided_slice %7 {offsets = [0, 2], sizes = [4, 128], strides = [1, 1]} : vector<4x130xbf16> to vector<4x128xbf16>
    %c2 = arith.constant 2 : index
    %c0_14 = arith.constant 0 : index
    %c0_15 = arith.constant 0 : index
    %20 = vector.load %arg6[%c2, %c0_14, %c0_15] : memref<3x6x4xbf16, #tpu.memory_space<vmem>>, vector<1x6x4xbf16>
    %21 = vector.shape_cast %20 : vector<1x6x4xbf16> to vector<6x4xbf16>
    %cst_16 = arith.constant dense<0.000000e+00> : vector<6x128xf32>
    %22 = tpu.matmul %21, %19, %cst_16 {dimension_numbers = #tpu.dot_dimension_numbers<[1], [0], [0], [1], [0, 0, 1, 1], [], []>} : vector<6x4xbf16>, vector<4x128xbf16>, vector<6x128xf32> -> vector<6x128xf32>
    %23 = arith.addf %18, %22 : vector<6x128xf32>
    %c0_17 = arith.constant 0 : index
    %c0_18 = arith.constant 0 : index
    %24 = vector.load %arg9[%c0_17, %c0_18] : memref<6x128xf32, #tpu.memory_space<vmem>>, vector<6x128xf32>
    tpu.vector_store %arg9[%c0_17, %c0_18], %23 {strides = array<i32>} : memref<6x128xf32, #tpu.memory_space<vmem>>, vector<6x128xf32>,
    %c0_i32_19 = arith.constant 0 : i32
    %25 = arith.cmpi eq, %arg3, %c0_i32_19 : i32
    %26 = arith.extui %25 : i1 to i32
    %c0_i32_20 = arith.constant 0 : i32
    %27 = arith.cmpi ne, %26, %c0_i32_20 : i32
    scf.if %27 {
      %c0_21 = arith.constant 0 : index
      %c0_22 = arith.constant 0 : index
      %28 = vector.load %arg9[%c0_21, %c0_22] : memref<6x128xf32, #tpu.memory_space<vmem>>, vector<6x128xf32>
      %c0_23 = arith.constant 0 : index
      %c0_24 = arith.constant 0 : index
      %29 = vector.load %arg7[%c0_23, %c0_24] : memref<6x1xf32, #tpu.memory_space<vmem>>, vector<6x1xf32>
      %30 = vector.broadcast %29 : vector<6x1xf32> to vector<6x128xf32>
      %31 = arith.addf %28, %30 : vector<6x128xf32>
      %c0_25 = arith.constant 0 : index
      %c0_26 = arith.constant 0 : index
      %c0_27 = arith.constant 0 : index
      %32 = vector.load %arg8[%c0_25, %c0_26, %c0_27] : memref<1x6x128xf32, #tpu.memory_space<vmem>>, vector<1x6x128xf32>
      %33 = vector.shape_cast %32 : vector<1x6x128xf32> to vector<6x128xf32>
      %34 = vector.shape_cast %31 : vector<6x128xf32> to vector<1x6x128xf32>
      tpu.vector_store %arg8[%c0_25, %c0_26, %c0_27], %34 {strides = array<i32>} : memref<1x6x128xf32, #tpu.memory_space<vmem>>, vector<1x6x128xf32>,
    } else {
    }
    return
  }
  func.func @transform_0(%arg0: i32, %arg1: i32, %arg2: i32, %arg3: i32) -> (i32, i32, i32) {
    %c0_i32 = arith.constant 0 : i32
    return %arg0, %arg3, %arg2 : i32, i32, i32
  }
  func.func @transform_1(%arg0: i32, %arg1: i32, %arg2: i32, %arg3: i32) -> (i32, i32, i32) {
    %c1_i32 = arith.constant 1 : i32
    %0 = arith.addi %arg2, %c1_i32 : i32
    %c0_i32 = arith.constant 0 : i32
    return %arg0, %arg3, %0 : i32, i32, i32
  }
  func.func @transform_2(%arg0: i32, %arg1: i32, %arg2: i32, %arg3: i32) -> (i32, i32, i32) {
    %c0_i32 = arith.constant 0 : i32
    %c0_i32_0 = arith.constant 0 : i32
    return %c0_i32, %arg1, %arg3 : i32, i32, i32
  }
  func.func @transform_3(%arg0: i32, %arg1: i32, %arg2: i32, %arg3: i32) -> (i32, i32) {
    %c0_i32 = arith.constant 0 : i32
    %c0_i32_0 = arith.constant 0 : i32
    return %arg1, %c0_i32 : i32, i32
  }
  func.func @transform_4(%arg0: i32, %arg1: i32, %arg2: i32, %arg3: i32) -> (i32, i32, i32) {
    %c0_i32 = arith.constant 0 : i32
    return %arg0, %arg1, %arg2 : i32, i32, i32
  }
}

</mosaic_0001>

<llo_original>
// kernel: tpu_custom_call.1
$region0: #{tpu_custom_call.1}
  #allocation0 [shape = 'u32[]', space=smem, size = 0x4, offset = 0x4, fixed_abs, tag = 'smem constant byte address 0x4 - core index']
  #allocation1 [shape = 'u32[72,128]{1,0:T(1,128)}', space=vmem, size = 0x9000, scoped, tag = 'internal scratch']
  #allocation2 [shape = 'f32[6,128]{1,0:T(8,128)}', space=vmem, size = 0x1000, scoped, tag = 'scratch operand']
  %s0 = inlined_call_operand.vmem [shape: bf16[2,4,256], index: 0, kind: input, shape index: {}]
  %s1 = inlined_call_operand.vmem [shape: bf16[2,4,256], index: 1, kind: input, shape index: {}]
  %s2 = inlined_call_operand.vmem [shape: bf16[3,6,4], index: 2, kind: input, shape index: {}]
  %s3 = inlined_call_operand.vmem [shape: f32[6,1], index: 3, kind: input, shape index: {}]
  %s4 = inlined_call_operand.vmem [shape: f32[2,6,128], index: 4, kind: output, shape index: {}]
  %s5 = sld [smem:[#allocation0]]
  $region57: #{tpu_custom_call.1} parent=0
    _
  %s7 = ssub.s32 1, %s5
  %s8 = scalar_select 0, %s7, %s5
  loop: start=0, step=1, limit=4
  $region2: #{tpu_custom_call.1} parent=0 // loop_pre_header
    _
  $region3: #{tpu_custom_call.1} parent=0 // loop_header
    %s10 = sphi 0, %s14
    %p11 = scmp.ge.s32.totalorder %s10, 4
    %s17 = sphi 0, %s43
    %s18 = sphi 0, %s39
    %s19 = sphi 0, %s35
    %s20 = sphi 0, %s31
    %s21 = sphi 0, %s17
    %s22 = sphi 0, %s18
    %s23 = sphi 0, %s19
    %s24 = sphi 0, %s20
    %s25 = sphi 0, %s21
    %s26 = sphi 0, %s22
    %s27 = sphi 0, %s23
    %s28 = sphi 0, %s24
    %s50 = sphi 0, %s52
    %s53 = sphi 0, %s50
    %s54 = sphi 0, %s53
    %s70 = sphi 0, %s54
    %s82 = sphi 0, %s84
    %s85 = sphi 0, %s82
    %s86 = sphi 0, %s85
    %s102 = sphi 0, %s86
    %s110 = sphi 0, %s112
    %s113 = sphi 0, %s110
    %s114 = sphi 0, %s113
    %s130 = sphi 0, %s114
    %s136 = sphi 0, %s138
    %s139 = sphi 0, %s136
    %s140 = sphi 0, %s139
    %s156 = sphi 0, %s140
    %s166 = sphi 0, %s168
    %s169 = sphi 0, %s166
    %s170 = sphi 0, %s169
    %s186 = sphi 0, %s170
  $region4: #{tpu_custom_call.1} parent=0 // loop_header_branch
    %13 = sbr.rel (%p11) target = $region8
  $region5: #{tpu_custom_call.1} parent=0 // loop_body
    %s15 = ssub.s32 %s10, 1
    %s16 = ssub.s32 %s10, 2
    %s29 = sadd.s32 1, %s20
    %p30 = scmp.ge.s32.totalorder %s29, 1
    %s31 = scalar_select %p30, 0, %s29
    %s32 = sadd.s32 1, %s19
    %s33 = scalar_select %p30, %s32, %s19
    %p34 = scmp.ge.s32.totalorder %s33, 1
    %s35 = scalar_select %p34, 0, %s33
    %s36 = sadd.s32 1, %s18
    %s37 = scalar_select %p34, %s36, %s18
    %p38 = scmp.ge.s32.totalorder %s37, 1
    %s39 = scalar_select %p38, 0, %s37
    %s40 = sadd.s32 1, %s17
    %s41 = scalar_select %p38, %s40, %s17
    %p42 = scmp.ge.s32.totalorder %s41, 2
    %s43 = scalar_select %p42, 0, %s41
    %s44 = ssub.s32 %s17, %s43
    %s45 = ssub.s32 %s20, %s31
    %s46 = sor.u32 %s44, %s45
    %s47 = ssub.s32 %s19, %s35
    %s48 = sor.u32 %s46, %s47
    %p49 = scmp.eq.s32.totalorder %s48, 0
    %s51 = sadd.s32 %s50, 1
    %s52 = scalar_select %p49, %s50, %s51
    %p55 = pneg %p49
    %p56 = scmp.eq.s32.totalorder %s10, 1
    %p57 = por %p55, %p56
    %p58 = scmp.ne.s32.totalorder %s50, %s53
    %p59 = scmp.eq.s32.totalorder %s10, 0
    %p60 = por %p58, %p59
    %p61 = scmp.ne.s32.totalorder %s50, %s53
    %p62 = scmp.eq.s32.totalorder %s15, 1
    %p63 = por %p61, %p62
    %p64 = scmp.ne.s32.totalorder %s53, %s54
    %p65 = scmp.eq.s32.totalorder %s15, 0
    %p66 = por %p64, %p65
    %p67 = scmp.ne.s32.totalorder %s53, %s54
    %p68 = scmp.eq.s32.totalorder %s16, 1
    %p69 = por %p67, %p68
    %p71 = scmp.ne.s32.totalorder %s54, %s70
    %p72 = scmp.eq.s32.totalorder %s16, 0
    %p73 = por %p71, %p72
    %s74 = sadd.s32 %s19, 1
    %s75 = sadd.s32 %s35, 1
    %s76 = ssub.s32 %s17, %s43
    %s77 = ssub.s32 %s20, %s31
    %s78 = sor.u32 %s76, %s77
    %s79 = ssub.s32 %s74, %s75
    %s80 = sor.u32 %s78, %s79
    %p81 = scmp.eq.s32.totalorder %s80, 0
    %s83 = sadd.s32 %s82, 1
    %s84 = scalar_select %p81, %s82, %s83
    %p87 = pneg %p81
    %p88 = scmp.eq.s32.totalorder %s10, 1
    %p89 = por %p87, %p88
    %p90 = scmp.ne.s32.totalorder %s82, %s85
    %p91 = scmp.eq.s32.totalorder %s10, 0
    %p92 = por %p90, %p91
    %p93 = scmp.ne.s32.totalorder %s82, %s85
    %p94 = scmp.eq.s32.totalorder %s15, 1
    %p95 = por %p93, %p94
    %p96 = scmp.ne.s32.totalorder %s85, %s86
    %p97 = scmp.eq.s32.totalorder %s15, 0
    %p98 = por %p96, %p97
    %p99 = scmp.ne.s32.totalorder %s85, %s86
    %p100 = scmp.eq.s32.totalorder %s16, 1
    %p101 = por %p99, %p100
    %p103 = scmp.ne.s32.totalorder %s86, %s102
    %p104 = scmp.eq.s32.totalorder %s16, 0
    %p105 = por %p103, %p104
    %s106 = ssub.s32 %s18, %s39
    %s107 = ssub.s32 %s20, %s31
    %s108 = sor.u32 %s106, %s107
    %p109 = scmp.eq.s32.totalorder %s108, 0
    %s111 = sadd.s32 %s110, 1
    %s112 = scalar_select %p109, %s110, %s111
    %p115 = pneg %p109
    %p116 = scmp.eq.s32.totalorder %s10, 1
    %p117 = por %p115, %p116
    %p118 = scmp.ne.s32.totalorder %s110, %s113
    %p119 = scmp.eq.s32.totalorder %s10, 0
    %p120 = por %p118, %p119
    %p121 = scmp.ne.s32.totalorder %s110, %s113
    %p122 = scmp.eq.s32.totalorder %s15, 1
    %p123 = por %p121, %p122
    %p124 = scmp.ne.s32.totalorder %s113, %s114
    %p125 = scmp.eq.s32.totalorder %s15, 0
    %p126 = por %p124, %p125
    %p127 = scmp.ne.s32.totalorder %s113, %s114
    %p128 = scmp.eq.s32.totalorder %s16, 1
    %p129 = por %p127, %p128
    %p131 = scmp.ne.s32.totalorder %s114, %s130
    %p132 = scmp.eq.s32.totalorder %s16, 0
    %p133 = por %p131, %p132
    %s134 = ssub.s32 %s18, %s39
    %p135 = scmp.eq.s32.totalorder %s134, 0
    %s137 = sadd.s32 %s136, 1
    %s138 = scalar_select %p135, %s136, %s137
    %p141 = pneg %p135
    %p142 = scmp.eq.s32.totalorder %s10, 1
    %p143 = por %p141, %p142
    %p144 = scmp.ne.s32.totalorder %s136, %s139
    %p145 = scmp.eq.s32.totalorder %s10, 0
    %p146 = por %p144, %p145
    %p147 = scmp.ne.s32.totalorder %s136, %s139
    %p148 = scmp.eq.s32.totalorder %s15, 1
    %p149 = por %p147, %p148
    %p150 = scmp.ne.s32.totalorder %s139, %s140
    %p151 = scmp.eq.s32.totalorder %s15, 0
    %p152 = por %p150, %p151
    %p153 = scmp.ne.s32.totalorder %s139, %s140
    %p154 = scmp.eq.s32.totalorder %s16, 1
    %p155 = por %p153, %p154
    %p157 = scmp.ne.s32.totalorder %s140, %s156
    %p158 = scmp.eq.s32.totalorder %s16, 0
    %p159 = por %p157, %p158
    %s160 = ssub.s32 %s17, %s43
    %s161 = ssub.s32 %s18, %s39
    %s162 = sor.u32 %s160, %s161
    %s163 = ssub.s32 %s19, %s35
    %s164 = sor.u32 %s162, %s163
    %p165 = scmp.eq.s32.totalorder %s164, 0
    %s167 = sadd.s32 %s166, 1
    %s168 = scalar_select %p165, %s166, %s167
    %p171 = pneg %p165
    %p172 = scmp.eq.s32.totalorder %s10, 1
    %p173 = por %p171, %p172
    %p174 = scmp.ne.s32.totalorder %s166, %s169
    %p175 = scmp.eq.s32.totalorder %s10, 0
    %p176 = por %p174, %p175
    %p177 = scmp.ne.s32.totalorder %s166, %s169
    %p178 = scmp.eq.s32.totalorder %s15, 1
    %p179 = por %p177, %p178
    %p180 = scmp.ne.s32.totalorder %s169, %s170
    %p181 = scmp.eq.s32.totalorder %s15, 0
    %p182 = por %p180, %p181
    %p183 = scmp.ne.s32.totalorder %s169, %s170
    %p184 = scmp.eq.s32.totalorder %s16, 1
    %p185 = por %p183, %p184
    %p187 = scmp.ne.s32.totalorder %s170, %s186
    %p188 = scmp.eq.s32.totalorder %s16, 0
    %p189 = por %p187, %p188
    %p190 = scmp.le.s32.totalorder 1, %s10
    %p191 = scmp.lt.s32.totalorder %s10, 3
    %p192 = pnand %p190, %p191
    %p193 = pneg %p192
    // Predicated region
    $region9: #{tpu_custom_call.1} parent=5 // pred_check
      _
    $region10: #{tpu_custom_call.1} parent=5 // pred_check_branch
      %195 = sbr.rel (%p192) target = $region12
    $region11: #{tpu_custom_call.1} parent=5 // pred_region
      %s196 = ssub.s32 %s10, 1
      // Predicated region
      $region13: #{tpu_custom_call.1} parent=11 // pred_check
        %p197 = pneg %p126
      $region14: #{tpu_custom_call.1} parent=11 // pred_check_branch
        %199 = sbr.rel (%p197) target = $region16
      $region15: #{tpu_custom_call.1} parent=11 // pred_region
        %p200 = scmp.lt.s32.totalorder %s22, 0
        %s201 = scalar_select %p200, %s22, 0
        %p202 = scmp.lt.s32.totalorder %s24, 0
        %s203 = scalar_select %p202, %s24, 0
        %s204 = sadd.s32 %s203, %s201
        %s205 = smul.addr %s204, 4
        %s206 = scalar_lea.vmem %s2, %s205
      $region16: #{tpu_custom_call.1} parent=11 // pred_fallthru
        _
      // Predicated region
      $region17: #{tpu_custom_call.1} parent=11 // pred_check
        %p207 = pneg %p152
      $region18: #{tpu_custom_call.1} parent=11 // pred_check_branch
        %209 = sbr.rel (%p207) target = $region20
      $region19: #{tpu_custom_call.1} parent=11 // pred_region
        %p210 = scmp.lt.s32.totalorder %s22, 0
        %s211 = scalar_select %p210, %s22, 0
        %s212 = smul.addr %s211, 8
        %s213 = scalar_lea.vmem %s3, %s212
      $region20: #{tpu_custom_call.1} parent=11 // pred_fallthru
        _
    $region12: #{tpu_custom_call.1} parent=5 // pred_fallthru
      _
    %p214 = scmp.lt.s32.totalorder %s10, 2
    // Predicated region
    $region21: #{tpu_custom_call.1} parent=5 // pred_check
      %p215 = pneg %p214
    $region22: #{tpu_custom_call.1} parent=5 // pred_check_branch
      %217 = sbr.rel (%p215) target = $region24
    $region23: #{tpu_custom_call.1} parent=5 // pred_region
      // Predicated region
      $region25: #{tpu_custom_call.1} parent=23 // pred_check
        %p218 = pneg %p60
      $region26: #{tpu_custom_call.1} parent=23 // pred_check_branch
        %220 = sbr.rel (%p218) target = $region28
      $region27: #{tpu_custom_call.1} parent=23 // pred_region
        %p221 = scmp.lt.s32.totalorder %s17, 1
        %s222 = scalar_select %p221, %s17, 1
        %p223 = scmp.lt.s32.totalorder %s20, 0
        %s224 = scalar_select %p223, %s20, 0
        %p225 = scmp.lt.s32.totalorder %s19, 1
        %s226 = scalar_select %p225, %s19, 1
        %s227 = smul.addr %s224, 2
        %s228 = sadd.s32 %s226, %s227
        %s229 = smul.addr %s222, 2
        %s230 = sadd.s32 %s228, %s229
        %s231 = smul.addr %s230, 2
        %s232 = scalar_lea.vmem %s0, %s231
      $region28: #{tpu_custom_call.1} parent=23 // pred_fallthru
        _
      // Predicated region
      $region29: #{tpu_custom_call.1} parent=23 // pred_check
        %p233 = pneg %p92
      $region30: #{tpu_custom_call.1} parent=23 // pred_check_branch
        %235 = sbr.rel (%p233) target = $region32
      $region31: #{tpu_custom_call.1} parent=23 // pred_region
        %s236 = sadd.s32 %s19, 1
        %p237 = scmp.lt.s32.totalorder %s17, 1
        %s238 = scalar_select %p237, %s17, 1
        %p239 = scmp.lt.s32.totalorder %s20, 0
        %s240 = scalar_select %p239, %s20, 0
        %p241 = scmp.lt.s32.totalorder %s236, 1
        %s242 = scalar_select %p241, %s236, 1
        %s243 = smul.addr %s240, 2
        %s244 = sadd.s32 %s242, %s243
        %s245 = smul.addr %s238, 2
        %s246 = sadd.s32 %s244, %s245
        %s247 = smul.addr %s246, 2
        %s248 = scalar_lea.vmem %s1, %s247
        %s249 = sadd.s32 %s19, 1
      $region32: #{tpu_custom_call.1} parent=23 // pred_fallthru
        _
    $region24: #{tpu_custom_call.1} parent=5 // pred_fallthru
      _
    %p250 = scmp.le.s32.totalorder 1, %s10
    %p251 = scmp.lt.s32.totalorder %s10, 3
    %p252 = pnand %p250, %p251
    %p253 = pneg %p252
    // Predicated region
    $region33: #{tpu_custom_call.1} parent=5 // pred_check
      _
    $region34: #{tpu_custom_call.1} parent=5 // pred_check_branch
      %255 = sbr.rel (%p252) target = $region36
    $region35: #{tpu_custom_call.1} parent=5 // pred_region
      %s256 = ssub.s32 %s10, 1
      %p257 = scmp.lt.s32.totalorder %s21, 1
      %s258 = scalar_select %p257, %s21, 1
      %p259 = scmp.lt.s32.totalorder %s24, 0
      %s260 = scalar_select %p259, %s24, 0
      %p261 = scmp.lt.s32.totalorder %s23, 1
      %s262 = scalar_select %p261, %s23, 1
      %s263 = smul.addr %s260, 2
      %s264 = sadd.s32 %s262, %s263
      %s265 = smul.addr %s258, 2
      %s266 = sadd.s32 %s264, %s265
      %s267 = smul.addr %s266, 2
      %s268 = scalar_lea.vmem %s0, %s267
      %p269 = pneg %p66
      %p270 = pneg %p63
      %s271 = sadd.s32 %s23, 1
      %p272 = scmp.lt.s32.totalorder %s21, 1
      %s273 = scalar_select %p272, %s21, 1
      %p274 = scmp.lt.s32.totalorder %s24, 0
      %s275 = scalar_select %p274, %s24, 0
      %p276 = scmp.lt.s32.totalorder %s271, 1
      %s277 = scalar_select %p276, %s271, 1
      %s278 = smul.addr %s275, 2
      %s279 = sadd.s32 %s277, %s278
      %s280 = smul.addr %s273, 2
      %s281 = sadd.s32 %s279, %s280
      %s282 = smul.addr %s281, 2
      %s283 = scalar_lea.vmem %s1, %s282
      %p284 = pneg %p98
      %p285 = pneg %p95
      %p286 = scmp.lt.s32.totalorder %s22, 0
      %s287 = scalar_select %p286, %s22, 0
      %p288 = scmp.lt.s32.totalorder %s24, 0
      %s289 = scalar_select %p288, %s24, 0
      %s290 = sadd.s32 %s289, %s287
      %s291 = smul.addr %s290, 4
      %s292 = scalar_lea.vmem %s2, %s291
      %p293 = pneg %p126
      %p294 = pneg %p123
      %p295 = scmp.lt.s32.totalorder %s22, 0
      %s296 = scalar_select %p295, %s22, 0
      %s297 = smul.addr %s296, 8
      %s298 = scalar_lea.vmem %s3, %s297
      %p299 = pneg %p152
      %p300 = pneg %p149
      %p301 = pneg %p182
      %p302 = pneg %p179
      %p303 = scmp.lt.s32.totalorder %s21, 1
      %s304 = scalar_select %p303, %s21, 1
      %p305 = scmp.lt.s32.totalorder %s22, 0
      %s306 = scalar_select %p305, %s22, 0
      %p307 = scmp.lt.s32.totalorder %s23, 0
      %s308 = scalar_select %p307, %s23, 0
      %s309 = sadd.s32 %s308, %s306
      %s310 = sadd.s32 %s309, %s304
      %s311 = smul.addr %s310, 8
      %s312 = scalar_lea.vmem %s4, %s311
      %p313 = scmp.lt.s32.totalorder %s21, 1
      %s314 = scalar_select %p313, %s21, 1
      %p315 = scmp.lt.s32.totalorder %s24, 0
      %s316 = scalar_select %p315, %s24, 0
      %p317 = scmp.lt.s32.totalorder %s23, 1
      %s318 = scalar_select %p317, %s23, 1
      %s319 = smul.addr %s316, 2
      %s320 = sadd.s32 %s318, %s319
      %s321 = smul.addr %s314, 2
      %s322 = sadd.s32 %s320, %s321
      %s323 = smul.addr %s322, 2
      %s324 = scalar_lea.vmem %s0, %s323
      %s325 = sadd.s32 %s23, 1
      %p326 = scmp.lt.s32.totalorder %s21, 1
      %s327 = scalar_select %p326, %s21, 1
      %p328 = scmp.lt.s32.totalorder %s24, 0
      %s329 = scalar_select %p328, %s24, 0
      %p330 = scmp.lt.s32.totalorder %s325, 1
      %s331 = scalar_select %p330, %s325, 1
      %s332 = smul.addr %s329, 2
      %s333 = sadd.s32 %s331, %s332
      %s334 = smul.addr %s327, 2
      %s335 = sadd.s32 %s333, %s334
      %s336 = smul.addr %s335, 2
      %s337 = scalar_lea.vmem %s1, %s336
      %s338 = sadd.s32 %s23, 1
      %p339 = scmp.lt.s32.totalorder %s22, 0
      %s340 = scalar_select %p339, %s22, 0
      %p341 = scmp.lt.s32.totalorder %s24, 0
      %s342 = scalar_select %p341, %s24, 0
      %s343 = sadd.s32 %s342, %s340
      %s344 = smul.addr %s343, 4
      %s345 = scalar_lea.vmem %s2, %s344
      %p346 = scmp.lt.s32.totalorder %s22, 0
      %s347 = scalar_select %p346, %s22, 0
      %s348 = smul.addr %s347, 8
      %s349 = scalar_lea.vmem %s3, %s348
      %p350 = scmp.lt.s32.totalorder %s21, 1
      %s351 = scalar_select %p350, %s21, 1
      %p352 = scmp.lt.s32.totalorder %s22, 0
      %s353 = scalar_select %p352, %s22, 0
      %p354 = scmp.lt.s32.totalorder %s23, 0
      %s355 = scalar_select %p354, %s23, 0
      %s356 = sadd.s32 %s355, %s353
      %s357 = sadd.s32 %s356, %s351
      %s358 = smul.addr %s357, 8
      %s359 = scalar_lea.vmem %s4, %s358
      %p361 = scmp.eq.s32.totalorder %s24, 0
      // Predicated region
      $region37: #{tpu_custom_call.1} parent=35 // pred_check
        %p362 = pneg %p361
      $region38: #{tpu_custom_call.1} parent=35 // pred_check_branch
        %364 = sbr.rel (%p362) target = $region40
      $region39: #{tpu_custom_call.1} parent=35 // pred_region
        %365 = vst [vmem:[#allocation2] sm:$0x3f] 0.0
      $region40: #{tpu_custom_call.1} parent=35 // pred_fallthru
        _
      %v366 = vld [vmem:[%s324] sm:$0x3]
      %v367 = vld [vmem:[%s337] sm:$0x3]
      %v368 = vld [vmem:[#allocation2] sm:$0x3f]
      %v369 = vld [vmem:[%s345] sm:$0x7]
      %vm370 = vcmask 31744
      %v372 = vsel %vm370, %v369, 0
      %vm374 = vcmask 1041408
      %v376 = vsel %vm374, %v366, 0
      %378 = vmatpush.bf16.msra.mxu0 0
      %379 = vmatpush.bf16.msra.mxu0 0
      %380 = vmatpush.bf16.msra.mxu0 0
      %381 = vmatpush.bf16.msra.mxu0 0
      %382 = vmatpush.bf16.msra.mxu0 0
      %383 = vmatpush.bf16.msra.mxu0 0
      %384 = vmatpush.bf16.msra.mxu0 0
      %385 = vmatpush.bf16.msra.mxu0 %v376
      %386 = vmatmul.bf16.gmra.mxu0 %v372
      %v387 = vpop.f32.mrf.mxu0
      %v388 = vadd.f32 0.0, %v387
      %v389 = vpop.f32.mrf.mxu0
      %390 = vdwg.mxu0
      %v391 = vadd.f32 %v368, %v388
      %s392 = scalar_lea.vmem %s345, 4
      %v393 = vld [vmem:[%s392] sm:$0x7]
      %396 = vrot.lane.b32.xlu0 %v366, 127
      %v397 = vpop.permute.xlu0 %396
      %398 = vrot.lane.b32.xlu0 %v367, 127
      %v399 = vpop.permute.xlu0 %398
      %vm400 = vcmask 1039360
      %v401 = vsel %vm400, %v397, %v399
      %v403 = vsel %vm370, %v393, 0
      %v406 = vsel %vm374, %v401, 0
      %408 = vmatpush.bf16.msra.mxu0 0
      %409 = vmatpush.bf16.msra.mxu0 0
      %410 = vmatpush.bf16.msra.mxu0 0
      %411 = vmatpush.bf16.msra.mxu0 0
      %412 = vmatpush.bf16.msra.mxu0 0
      %413 = vmatpush.bf16.msra.mxu0 0
      %414 = vmatpush.bf16.msra.mxu0 0
      %415 = vmatpush.bf16.msra.mxu0 %v406
      %416 = vmatmul.bf16.gmra.mxu0 %v403
      %v417 = vpop.f32.mrf.mxu0
      %v418 = vadd.f32 0.0, %v417
      %v419 = vpop.f32.mrf.mxu0
      %420 = vdwg.mxu0
      %v421 = vadd.f32 %v391, %v418
      %s422 = scalar_lea.vmem %s345, 8
      %v423 = vld [vmem:[%s422] sm:$0x7]
      %424 = vrot.lane.b32.xlu0 %v366, 126
      %v425 = vpop.permute.xlu0 %424
      %426 = vrot.lane.b32.xlu0 %v367, 126
      %v427 = vpop.permute.xlu0 %426
      %vm428 = vcmask 1031168
      %v429 = vsel %vm428, %v425, %v427
      %v431 = vsel %vm370, %v423, 0
      %v434 = vsel %vm374, %v429, 0
      %436 = vmatpush.bf16.msra.mxu0 0
      %437 = vmatpush.bf16.msra.mxu0 0
      %438 = vmatpush.bf16.msra.mxu0 0
      %439 = vmatpush.bf16.msra.mxu0 0
      %440 = vmatpush.bf16.msra.mxu0 0
      %441 = vmatpush.bf16.msra.mxu0 0
      %442 = vmatpush.bf16.msra.mxu0 0
      %443 = vmatpush.bf16.msra.mxu0 %v434
      %444 = vmatmul.bf16.gmra.mxu0 %v431
      %v445 = vpop.f32.mrf.mxu0
      %v446 = vadd.f32 0.0, %v445
      %v447 = vpop.f32.mrf.mxu0
      %448 = vdwg.mxu0
      %v449 = vadd.f32 %v421, %v446
      %450 = vst [vmem:[#allocation2] sm:$0x3f] %v449
      // Predicated region
      $region41: #{tpu_custom_call.1} parent=35 // pred_check
        %p451 = pneg %p361
      $region42: #{tpu_custom_call.1} parent=35 // pred_check_branch
        %453 = sbr.rel (%p451) target = $region44
      $region43: #{tpu_custom_call.1} parent=35 // pred_region
        %v454 = vld [vmem:[#allocation2] sm:$0x3f]
        %v455 = vld [vmem:[%s349] sm:$0x3f]
        %457 = vset.pattern.permute.xlu0 0
        %458 = vperm.xlu0 %457, %v455
        %v459 = vpop.permute.xlu0 %458
        %v461 = vadd.f32 %v454, %v459
        %462 = vst [vmem:[%s359] sm:$0x3f] %v461
      $region44: #{tpu_custom_call.1} parent=35 // pred_fallthru
        _
      %p463 = scmp.lt.s32.totalorder %s21, 1
      %s464 = scalar_select %p463, %s21, 1
      %p465 = scmp.lt.s32.totalorder %s22, 0
      %s466 = scalar_select %p465, %s22, 0
      %p467 = scmp.lt.s32.totalorder %s23, 0
      %s468 = scalar_select %p467, %s23, 0
      %s469 = sadd.s32 %s468, %s466
      %s470 = sadd.s32 %s469, %s464
      %s471 = smul.addr %s470, 8
      %s472 = scalar_lea.vmem %s4, %s471
      // Predicated region
      $region45: #{tpu_custom_call.1} parent=35 // pred_check
        %p473 = pneg %p179
      $region46: #{tpu_custom_call.1} parent=35 // pred_check_branch
        %475 = sbr.rel (%p473) target = $region48
      $region47: #{tpu_custom_call.1} parent=35 // pred_region
        _
      $region48: #{tpu_custom_call.1} parent=35 // pred_fallthru
        _
    $region36: #{tpu_custom_call.1} parent=5 // pred_fallthru
      _
    %p476 = scmp.le.s32.totalorder 2, %s10
    // Predicated region
    $region49: #{tpu_custom_call.1} parent=5 // pred_check
      %p477 = pneg %p476
    $region50: #{tpu_custom_call.1} parent=5 // pred_check_branch
      %479 = sbr.rel (%p477) target = $region52
    $region51: #{tpu_custom_call.1} parent=5 // pred_region
      %s480 = ssub.s32 %s10, 2
      // Predicated region
      $region53: #{tpu_custom_call.1} parent=51 // pred_check
        %p481 = pneg %p185
      $region54: #{tpu_custom_call.1} parent=51 // pred_check_branch
        %483 = sbr.rel (%p481) target = $region56
      $region55: #{tpu_custom_call.1} parent=51 // pred_region
        %p484 = scmp.lt.s32.totalorder %s25, 1
        %s485 = scalar_select %p484, %s25, 1
        %p486 = scmp.lt.s32.totalorder %s26, 0
        %s487 = scalar_select %p486, %s26, 0
        %p488 = scmp.lt.s32.totalorder %s27, 0
        %s489 = scalar_select %p488, %s27, 0
        %s490 = sadd.s32 %s489, %s487
        %s491 = sadd.s32 %s490, %s485
        %s492 = smul.addr %s491, 8
        %s493 = scalar_lea.vmem %s4, %s492
      $region56: #{tpu_custom_call.1} parent=51 // pred_fallthru
        _
    $region52: #{tpu_custom_call.1} parent=5 // pred_fallthru
      _
  $region6: #{tpu_custom_call.1} parent=0 // loop_footer
    %s14 = sadd.s32 1, %s10
  $region7: #{tpu_custom_call.1} parent=0 // loop_footer_branch
    %9 = sbr.rel target = $region3
  $region8: #{tpu_custom_call.1} parent=0 // loop_exit
    _

</llo_original>
